<compile_context>
chip_gen: v5e
topology: v5e:2x2
jax: 0.10.0
libtpu: 0.0.40
codegen_flags: <defaults>
</compile_context>

<pallas_src>
import functools
import math

import jax
import jax.numpy as jnp
from jax import lax
from jax.experimental import pallas as pl
from jax.experimental.pallas import tpu as pltpu


def _shift_lanes(x, s, width):
    """y[:, p] = x[:, (p + s) mod width]; wrapped lanes are masked by the caller."""
    r = (-s) % width
    if r == 0:
        return x
    if width % 128 == 0:
        return pltpu.roll(x, r, axis=1)   # XLU lane rotate (free slot here)
    return jnp.roll(x, r, axis=1)         # rare fallback for non-128-multiple widths


def _make_tcl_kernel(K, W, pad, P, P_w, NBC_in, NBC_out):
    """Build the TCL kernel for static conv_size K, row width W.

    P   = H * W      (flattened input spatial extent per image)
    P_w = H_out * W  (flattened output spatial extent; == P for odd K)
    """

    def kernel(x_ref, w_ref, b_ref, o_ref):
        # x_ref: (NBC_in, P)           NB images' channels stacked on sublanes
        # w_ref: (K, NBC_out, NBC_in)  per-tap block-diagonal weights (resident)
        # b_ref: (NBC_out, 1)          bias column (lane-broadcast)
        # o_ref: (NBC_out, P_w)
        x = x_ref[...]
        if P_w > P:
            # Even conv_size: H_out = H + 1 -> extend the lane axis with zeros.
            x = jnp.concatenate([x, jnp.zeros((NBC_in, P_w - P), x.dtype)], axis=1)

        lane = lax.broadcasted_iota(jnp.int32, (1, P_w), 1)

        acc = None
        for k in range(K):
            # Tap k of the (K,1) conv reads input lane p + s (whole-row shifts).
            s = (k - pad) * W
            if s == 0 and P_w == P:
                xk = x
            else:
                shifted = _shift_lanes(x, s, P_w)
                valid = jnp.logical_and(lane >= -s, lane < P - s)  # zero padding rows
                xk = jnp.where(valid, shifted, 0.0)
            # K is small & static -> unrolled; f32 register accumulation.
            # (Default MXU precision is sufficient for the 1e-5 check at these sizes.)
            term = jnp.dot(w_ref[k], xk, preferred_element_type=jnp.float32)
            acc = term if acc is None else acc + term

        acc = acc + b_ref[...].astype(jnp.float32)       # bias epilogue
        o_ref[...] = acc.astype(o_ref.dtype)             # single lane-dense store

    return kernel


def tcl_forward(x_nchw, weight_oihw, bias, conv_size, *,
                target_block_bytes=1 << 20,
                vmem_limit_bytes=48 * 1024 * 1024):
    """Forward pass of TCL.

    x_nchw:      (N, C, H, W)
    weight_oihw: (C_out, C_in, conv_size, 1)
    bias:        (C_out,)
    """
    N, C, H, W = x_nchw.shape
    C_out, C_in, Kh, Kw = weight_oihw.shape
    assert C_in == C and Kw == 1 and Kh == conv_size
    K = conv_size
    pad = K // 2
    H_out = H + 2 * pad - K + 1          # == H for odd K; H + 1 for even K (PyTorch)
    P = H * W
    P_w = H_out * W                      # >= P
    itemsize = jnp.dtype(x_nchw.dtype).itemsize

    # NB images per grid step: fill the 8-sublane f32 tile when C is small and
    # grow the block toward ~target_block_bytes to amortize per-step overhead.
    base = 8 // math.gcd(C, 8)
    NB = base
    while NB < N and (2 * NB) * C * P * itemsize <= target_block_bytes:
        NB *= 2
    NB = min(NB, N)
    NBC_in = NB * C
    NBC_out = NB * C_out
    grid_n = pl.cdiv(N, NB)

    # VMEM estimate: double-buffered in/out blocks + resident weights + temporaries.
    est = ((2 * NBC_in * P + 2 * NBC_out * P_w) * itemsize
           + 2 * K * NBC_out * NBC_in * itemsize
           + (K + 3) * NBC_in * P_w * 4)
    # TODO(synk): add spatial (H) tiling with in-kernel halo handling for very large H*W.
    assert est <= vmem_limit_bytes - (8 << 20), (
        f"TCL Pallas kernel: per-image spatial extent too large for VMEM ({est} B)")

    # Free reshape under jit (merges adjacent dims); activation is read once by the kernel.
    x_flat = x_nchw.reshape(N * C, P)

    # Per-tap weights, expanded block-diagonally over the NB stacked images.
    w_taps = jnp.transpose(weight_oihw[:, :, :, 0], (2, 0, 1))       # (K, C_out, C_in)
    eye_nb = jnp.eye(NB, dtype=w_taps.dtype)
    w_bd = jnp.einsum("ab,koi->kaobi", eye_nb, w_taps)
    w_bd = w_bd.reshape(K, NBC_out, NBC_in)
    b_bd = jnp.tile(bias, NB).reshape(NBC_out, 1)

    kernel = _make_tcl_kernel(K, W, pad, P, P_w, NBC_in, NBC_out)

    out_flat = pl.pallas_call(
        kernel,
        out_shape=jax.ShapeDtypeStruct((N * C_out, P_w), x_nchw.dtype),
        grid_spec=pltpu.PrefetchScalarGridSpec(
            num_scalar_prefetch=0,
            grid=(grid_n,),
            in_specs=[
                # activation block: NB images x C channels, full flattened spatial axis
                pl.BlockSpec((NBC_in, P), lambda n: (n, 0)),
                # weights + bias: constant index_map -> resident in VMEM
                pl.BlockSpec((K, NBC_out, NBC_in), lambda n: (0, 0, 0)),
                pl.BlockSpec((NBC_out, 1), lambda n: (0, 0)),
            ],
            out_specs=pl.BlockSpec((NBC_out, P_w), lambda n: (n, 0)),
        ),
        compiler_params=pltpu.CompilerParams(
            dimension_semantics=("parallel",),
            vmem_limit_bytes=vmem_limit_bytes,
        ),
    )(x_flat, w_bd, b_bd)

    return out_flat.reshape(N, C_out, H_out, W)   # exact size: no post-kernel slice


def _reference(x_nchw, weight_oihw, bias, conv_size):
    pad = conv_size // 2
    y = lax.conv_general_dilated(
        x_nchw, weight_oihw,
        window_strides=(1, 1),
        padding=((pad, pad), (0, 0)),
        dimension_numbers=("NCHW", "OIHW", "NCHW"),
    )
    return y + bias[None, :, None, None]


if __name__ == "__main__":
    # Small shapes consistent with the module: x is NCHW with channels == dim.
    N, dim, H, W = 2, 4, 16, 16
    conv_size = 3

    key = jax.random.PRNGKey(0)
    kx, kw, kb = jax.random.split(key, 3)

    x = jax.random.normal(kx, (N, dim, H, W), dtype=jnp.float32)

    # Deterministic kaiming_normal_-style init for weight (fan_in mode, gain=sqrt(2)).
    fan_in = dim * conv_size * 1
    w_std = (2.0 / fan_in) ** 0.5
    weight = w_std * jax.random.normal(kw, (dim, dim, conv_size, 1), dtype=jnp.float32)
    # Conv2d default bias init: uniform(-1/sqrt(fan_in), 1/sqrt(fan_in)).
    bound = 1.0 / (fan_in ** 0.5)
    bias = jax.random.uniform(kb, (dim,), dtype=jnp.float32, minval=-bound, maxval=bound)

    fwd = jax.jit(functools.partial(tcl_forward, conv_size=conv_size))
    y = jax.block_until_ready(fwd(x, weight, bias))

    y_ref = _reference(x, weight, bias, conv_size)
    assert y.shape == y_ref.shape, (y.shape, y_ref.shape)
    assert jnp.allclose(y, y_ref, atol=1e-5, rtol=1e-5), "mismatch vs reference conv"

    print("KERNEL_OK")
</pallas_src>

<mosaic_0001>
module attributes {stable_mosaic.version = 11 : i64} {
  func.func @kernel(%arg0: i32, %arg1: memref<8x256xf32, #tpu.memory_space<vmem>>, %arg2: memref<3x8x8xf32, #tpu.memory_space<vmem>>, %arg3: memref<8x1xf32, #tpu.memory_space<vmem>>, %arg4: memref<8x256xf32, #tpu.memory_space<vmem>>) attributes {dimension_semantics = [#tpu.dimension_semantics<parallel>], iteration_bounds = array<i64: 1>, scalar_prefetch = 0 : i64, scratch_operands = 0 : i64, tpu.core_type = #tpu.core_type<tc>, window_params = [{transform_indices = @transform_0, window_bounds = array<i64: 8, 256>}, {pipeline_mode = #tpu.pipeline_mode<synchronous>, transform_indices = @transform_1, window_bounds = array<i64: 3, 8, 8>}, {pipeline_mode = #tpu.pipeline_mode<synchronous>, transform_indices = @transform_2, window_bounds = array<i64: 8, 1>}, {transform_indices = @transform_3, window_bounds = array<i64: 8, 256>}]} {
    %c0 = arith.constant 0 : index
    %c0_0 = arith.constant 0 : index
    %0 = vector.load %arg1[%c0, %c0_0] : memref<8x256xf32, #tpu.memory_space<vmem>>, vector<8x256xf32>
    %1 = tpu.iota {dimensions = array<i32: 1>} : vector<1x256xi32>
    %c16_i32 = arith.constant 16 : i32
    %2 = tpu.dynamic_rotate %0 by %c16_i32 dim 1 : vector<8x256xf32>, i32 -> vector<8x256xf32>
    %c16_i32_1 = arith.constant 16 : i32
    %3 = vector.broadcast %c16_i32_1 : i32 to vector<1x256xi32>
    %4 = arith.cmpi sge, %1, %3 : vector<1x256xi32>
    %c272_i32 = arith.constant 272 : i32
    %5 = vector.broadcast %c272_i32 : i32 to vector<1x256xi32>
    %6 = arith.cmpi slt, %1, %5 : vector<1x256xi32>
    %7 = arith.andi %4, %6 : vector<1x256xi1>
    %cst = arith.constant 0.000000e+00 : f32
    %8 = vector.shape_cast %7 : vector<1x256xi1> to vector<1x256xi1>
    %9 = vector.broadcast %8 : vector<1x256xi1> to vector<8x256xi1>
    %10 = vector.broadcast %cst : f32 to vector<8x256xf32>
    %11 = arith.select %9, %2, %10 : vector<8x256xi1>, vector<8x256xf32>
    %c0_2 = arith.constant 0 : index
    %c0_3 = arith.constant 0 : index
    %c0_4 = arith.constant 0 : index
    %12 = vector.load %arg2[%c0_2, %c0_3, %c0_4] : memref<3x8x8xf32, #tpu.memory_space<vmem>>, vector<1x8x8xf32>
    %13 = vector.shape_cast %12 : vector<1x8x8xf32> to vector<8x8xf32>
    %cst_5 = arith.constant dense<0.000000e+00> : vector<8x256xf32>
    %14 = tpu.matmul %13, %11, %cst_5 {dimension_numbers = #tpu.dot_dimension_numbers<[1], [0], [0], [1], [0, 0, 1, 1], [], []>} : vector<8x8xf32>, vector<8x256xf32>, vector<8x256xf32> -> vector<8x256xf32>
    %c1 = arith.constant 1 : index
    %c0_6 = arith.constant 0 : index
    %c0_7 = arith.constant 0 : index
    %15 = vector.load %arg2[%c1, %c0_6, %c0_7] : memref<3x8x8xf32, #tpu.memory_space<vmem>>, vector<1x8x8xf32>
    %16 = vector.shape_cast %15 : vector<1x8x8xf32> to vector<8x8xf32>
    %cst_8 = arith.constant dense<0.000000e+00> : vector<8x256xf32>
    %17 = tpu.matmul %16, %0, %cst_8 {dimension_numbers = #tpu.dot_dimension_numbers<[1], [0], [0], [1], [0, 0, 1, 1], [], []>} : vector<8x8xf32>, vector<8x256xf32>, vector<8x256xf32> -> vector<8x256xf32>
    %18 = arith.addf %14, %17 : vector<8x256xf32>
    %c240_i32 = arith.constant 240 : i32
    %19 = tpu.dynamic_rotate %0 by %c240_i32 dim 1 : vector<8x256xf32>, i32 -> vector<8x256xf32>
    %c-16_i32 = arith.constant -16 : i32
    %20 = vector.broadcast %c-16_i32 : i32 to vector<1x256xi32>
    %21 = arith.cmpi sge, %1, %20 : vector<1x256xi32>
    %c240_i32_9 = arith.constant 240 : i32
    %22 = vector.broadcast %c240_i32_9 : i32 to vector<1x256xi32>
    %23 = arith.cmpi slt, %1, %22 : vector<1x256xi32>
    %24 = arith.andi %21, %23 : vector<1x256xi1>
    %cst_10 = arith.constant 0.000000e+00 : f32
    %25 = vector.shape_cast %24 : vector<1x256xi1> to vector<1x256xi1>
    %26 = vector.broadcast %25 : vector<1x256xi1> to vector<8x256xi1>
    %27 = vector.broadcast %cst_10 : f32 to vector<8x256xf32>
    %28 = arith.select %26, %19, %27 : vector<8x256xi1>, vector<8x256xf32>
    %c2 = arith.constant 2 : index
    %c0_11 = arith.constant 0 : index
    %c0_12 = arith.constant 0 : index
    %29 = vector.load %arg2[%c2, %c0_11, %c0_12] : memref<3x8x8xf32, #tpu.memory_space<vmem>>, vector<1x8x8xf32>
    %30 = vector.shape_cast %29 : vector<1x8x8xf32> to vector<8x8xf32>
    %cst_13 = arith.constant dense<0.000000e+00> : vector<8x256xf32>
    %31 = tpu.matmul %30, %28, %cst_13 {dimension_numbers = #tpu.dot_dimension_numbers<[1], [0], [0], [1], [0, 0, 1, 1], [], []>} : vector<8x8xf32>, vector<8x256xf32>, vector<8x256xf32> -> vector<8x256xf32>
    %32 = arith.addf %18, %31 : vector<8x256xf32>
    %c0_14 = arith.constant 0 : index
    %c0_15 = arith.constant 0 : index
    %33 = vector.load %arg3[%c0_14, %c0_15] : memref<8x1xf32, #tpu.memory_space<vmem>>, vector<8x1xf32>
    %34 = vector.broadcast %33 : vector<8x1xf32> to vector<8x256xf32>
    %35 = arith.addf %32, %34 : vector<8x256xf32>
    %c0_16 = arith.constant 0 : index
    %c0_17 = arith.constant 0 : index
    %36 = vector.load %arg4[%c0_16, %c0_17] : memref<8x256xf32, #tpu.memory_space<vmem>>, vector<8x256xf32>
    tpu.vector_store %arg4[%c0_16, %c0_17], %35 {strides = array<i32>} : memref<8x256xf32, #tpu.memory_space<vmem>>, vector<8x256xf32>,
    return
  }
  func.func @transform_0(%arg0: i32) -> (i32, i32) {
    %c0_i32 = arith.constant 0 : i32
    %c0_i32_0 = arith.constant 0 : i32
    return %arg0, %c0_i32 : i32, i32
  }
  func.func @transform_1(%arg0: i32) -> (i32, i32, i32) {
    %c0_i32 = arith.constant 0 : i32
    %c0_i32_0 = arith.constant 0 : i32
    %c0_i32_1 = arith.constant 0 : i32
    %c0_i32_2 = arith.constant 0 : i32
    return %c0_i32, %c0_i32_0, %c0_i32_1 : i32, i32, i32
  }
  func.func @transform_2(%arg0: i32) -> (i32, i32) {
    %c0_i32 = arith.constant 0 : i32
    %c0_i32_0 = arith.constant 0 : i32
    %c0_i32_1 = arith.constant 0 : i32
    return %c0_i32, %c0_i32_0 : i32, i32
  }
  func.func @transform_3(%arg0: i32) -> (i32, i32) {
    %c0_i32 = arith.constant 0 : i32
    %c0_i32_0 = arith.constant 0 : i32
    return %arg0, %c0_i32 : i32, i32
  }
}

</mosaic_0001>

<llo_original>
// kernel: tile.8
$region0: #{tile.8}
  #allocation0 [shape = 's32[1]{0}', space=sflag, size = 0x4, scoped, tag = 'scoped memory for tile.8']
  %s0 = inlined_call_operand.vmem [shape: f32[4], index: 0, kind: input, shape index: {}]
  %s1 = inlined_call_operand.vmem [shape: f32[2,4], index: 1, kind: output, shape index: {}]
  // Predicated region
  $region2: #{tile.8} parent=0 // pred_check
    _
  $region3: #{tile.8} parent=0 // pred_check_branch
    %3 = sbr.rel (0) target = $region5
  $region4: #{tile.8} parent=0 // pred_region
    _
  $region5: #{tile.8} parent=0 // pred_fallthru
    _
  %v4 = vld [vmem:[%s0] ss:$0 sm:$0xff]
  %5 = vst [vmem:[%s1] sm:$0x3] %v4

// kernel: tile.0
$region0: #{tile.0}
  %s0 = inlined_call_operand.vmem [shape: f32[2,4], index: 0, kind: input, shape index: {}]
  %s1 = inlined_call_operand.vmem [shape: f32[8,1], index: 1, kind: output, shape index: {}]
  $region1: #{tile.0} parent=0
    #allocation0 [shape = 'u8[4096]{0}', space=vmem, size = 0x1000, scoped, tag = 'scoped mem for input reshape']
    %s3 = ssub.s32 4, 1
    %v4 = vld [vmem:[%s0] sm:%s3]
    %5 = vst [vmem:[#allocation0] sm:%s3] %v4
    %v6 = vld [vmem:[#allocation0] sm:$0x3]
    %vm7 = vcmask 7168
    %8 = vst.msk [vmem:[%s1] ss:$4 sm:$0x3] %vm7, %v6
    %v9 = vld [vmem:[#allocation0] sm:$0x3]
    %10 = vrot.lane.b32.xlu0 %v9, 127
    %v11 = vpop.permute.xlu0 %10
    %vm12 = vcmask 7168
    %s13 = scalar_lea.vmem %s1, 1
    %14 = vst.msk [vmem:[%s13] ss:$4 sm:$0x3] %vm12, %v11
    %v15 = vld [vmem:[#allocation0] sm:$0x3]
    %16 = vrot.lane.b32.xlu0 %v15, 126
    %v17 = vpop.permute.xlu0 %16
    %vm18 = vcmask 7168
    %s19 = scalar_lea.vmem %s1, 2
    %20 = vst.msk [vmem:[%s19] ss:$4 sm:$0x3] %vm18, %v17
    %v21 = vld [vmem:[#allocation0] sm:$0x3]
    %22 = vrot.lane.b32.xlu0 %v21, 125
    %v23 = vpop.permute.xlu0 %22
    %vm24 = vcmask 7168
    %s25 = scalar_lea.vmem %s1, 3
    %26 = vst.msk [vmem:[%s25] ss:$4 sm:$0x3] %vm24, %v23

// kernel: tcl_forward.1
$region0: #{tcl_forward.1}
  #allocation0 [shape = 'u32[]', space=smem, size = 0x4, offset = 0x4, fixed_abs, tag = 'smem constant byte address 0x4 - core index']
  #allocation1 [shape = 'u32[72,128]{1,0:T(1,128)}', space=vmem, size = 0x9000, scoped, tag = 'internal scratch']
  %s0 = inlined_call_operand.vmem [shape: f32[8,256], index: 0, kind: input, shape index: {}]
  %s1 = inlined_call_operand.vmem [shape: f32[3,8,8], index: 1, kind: input, shape index: {}]
  %s2 = inlined_call_operand.vmem [shape: f32[8,1], index: 2, kind: input, shape index: {}]
  %s3 = inlined_call_operand.vmem [shape: f32[8,256], index: 3, kind: output, shape index: {}]
  %s4 = sld [smem:[#allocation0]]
  $region22: #{tcl_forward.1} parent=0
    _
  %s6 = ssub.s32 1, %s4
  %s7 = scalar_select 0, %s6, %s4
  // Predicated region
  $region2: #{tcl_forward.1} parent=0 // pred_check
    _
  $region3: #{tcl_forward.1} parent=0 // pred_check_branch
    %9 = sbr.rel (0) target = $region5
  $region4: #{tcl_forward.1} parent=0 // pred_region
    _
  $region5: #{tcl_forward.1} parent=0 // pred_fallthru
    _
  // Predicated region
  $region6: #{tcl_forward.1} parent=0 // pred_check
    _
  $region7: #{tcl_forward.1} parent=0 // pred_check_branch
    %11 = sbr.rel (0) target = $region9
  $region8: #{tcl_forward.1} parent=0 // pred_region
    _
  $region9: #{tcl_forward.1} parent=0 // pred_fallthru
    _
  // Predicated region
  $region10: #{tcl_forward.1} parent=0 // pred_check
    _
  $region11: #{tcl_forward.1} parent=0 // pred_check_branch
    %13 = sbr.rel (0) target = $region13
  $region12: #{tcl_forward.1} parent=0 // pred_region
    _
  $region13: #{tcl_forward.1} parent=0 // pred_fallthru
    _
  %v14 = vld [vmem:[%s0] sm:$0xff]
  %v15 = vld [vmem:[%s0 + $0x8] sm:$0xff]
  %v16 = vlaneseq
  %v17 = vand.u32 %v16, 127
  %v18 = vadd.s32 %v17, 128
  %19 = vrot.lane.b32.xlu0 %v14, 16
  %v20 = vpop.permute.xlu0 %19
  %21 = vrot.lane.b32.xlu0 %v15, 16
  %v22 = vpop.permute.xlu0 %21
  %vm23 = vcmp.lt.s32.totalorder %v17, 16
  %v24 = vsel %vm23, %v20, %v22
  %v25 = vsel %vm23, %v22, %v20
  %vm26 = vcmp.ge.s32.totalorder %v17, 16
  %vm27 = vcmp.ge.s32.totalorder %v18, 16
  %vm28 = vcmp.lt.s32.totalorder %v17, 272
  %vm29 = vcmp.lt.s32.totalorder %v18, 272
  %vm30 = vmand %vm26, %vm28
  %vm31 = vmand %vm27, %vm29
  %v32 = vsel %vm30, 1, 0
  %v33 = vsel %vm31, 1, 0
  %vm34 = vcmp.eq.s32.totalorder %v32, 1
  %vm35 = vcmp.eq.s32.totalorder %v33, 1
  %v36 = vsel %vm34, %v25, 0.0
  %v37 = vsel %vm35, %v24, 0.0
  %v38 = vld [vmem:[%s1] sm:$0xff]
  %s39 = scalar_lea.vmem %s1, 8
  %v40 = vld [vmem:[%s39] sm:$0xff]
  %vm41 = vcmask 64512
  %v43 = vsel %vm41, %v40, 0
  %45 = vmatpush.msra.mxu0 0.0
  %46 = vmatpush.msra.mxu0 0.0
  %47 = vmatpush.msra.mxu0 0.0
  %48 = vmatpush.msra.mxu0 0.0
  %49 = vmatpush.msra.mxu0 0.0
  %50 = vmatpush.msra.mxu0 0.0
  %51 = vmatpush.msra.mxu0 0.0
  %52 = vmatpush.msra.mxu0 0.0
  %53 = vmatpush.msra.mxu0 0.0
  %54 = vmatpush.msra.mxu0 0.0
  %55 = vmatpush.msra.mxu0 0.0
  %56 = vmatpush.msra.mxu0 0.0
  %57 = vmatpush.msra.mxu0 0.0
  %58 = vmatpush.msra.mxu0 0.0
  %59 = vmatpush.msra.mxu0 0.0
  %60 = vmatpush.msra.mxu0 %v14
  %61 = vmatmul.f32.gmra.mxu0 %v43
  %v62 = vpop.f32.mrf.mxu0
  %v63 = vadd.f32 0.0, %v62
  %64 = vdwg.mxu0
  %65 = vmatpush.msra.mxu0 0.0
  %66 = vmatpush.msra.mxu0 0.0
  %67 = vmatpush.msra.mxu0 0.0
  %68 = vmatpush.msra.mxu0 0.0
  %69 = vmatpush.msra.mxu0 0.0
  %70 = vmatpush.msra.mxu0 0.0
  %71 = vmatpush.msra.mxu0 0.0
  %72 = vmatpush.msra.mxu0 0.0
  %73 = vmatpush.msra.mxu0 0.0
  %74 = vmatpush.msra.mxu0 0.0
  %75 = vmatpush.msra.mxu0 0.0
  %76 = vmatpush.msra.mxu0 0.0
  %77 = vmatpush.msra.mxu0 0.0
  %78 = vmatpush.msra.mxu0 0.0
  %79 = vmatpush.msra.mxu0 0.0
  %80 = vmatpush.msra.mxu0 %v15
  %81 = vmatmul.f32.gmra.mxu0 %v43
  %v82 = vpop.f32.mrf.mxu0
  %v83 = vadd.f32 0.0, %v82
  %84 = vdwg.mxu0
  %v86 = vsel %vm41, %v38, 0
  %88 = vmatpush.msra.mxu0 0.0
  %89 = vmatpush.msra.mxu0 0.0
  %90 = vmatpush.msra.mxu0 0.0
  %91 = vmatpush.msra.mxu0 0.0
  %92 = vmatpush.msra.mxu0 0.0
  %93 = vmatpush.msra.mxu0 0.0
  %94 = vmatpush.msra.mxu0 0.0
  %95 = vmatpush.msra.mxu0 0.0
  %96 = vmatpush.msra.mxu0 0.0
  %97 = vmatpush.msra.mxu0 0.0
  %98 = vmatpush.msra.mxu0 0.0
  %99 = vmatpush.msra.mxu0 0.0
  %100 = vmatpush.msra.mxu0 0.0
  %101 = vmatpush.msra.mxu0 0.0
  %102 = vmatpush.msra.mxu0 0.0
  %103 = vmatpush.msra.mxu0 %v36
  %104 = vmatmul.f32.gmra.mxu0 %v86
  %v105 = vpop.f32.mrf.mxu0
  %v106 = vadd.f32 %v63, %v105
  %107 = vdwg.mxu0
  %108 = vmatpush.msra.mxu0 0.0
  %109 = vmatpush.msra.mxu0 0.0
  %110 = vmatpush.msra.mxu0 0.0
  %111 = vmatpush.msra.mxu0 0.0
  %112 = vmatpush.msra.mxu0 0.0
  %113 = vmatpush.msra.mxu0 0.0
  %114 = vmatpush.msra.mxu0 0.0
  %115 = vmatpush.msra.mxu0 0.0
  %116 = vmatpush.msra.mxu0 0.0
  %117 = vmatpush.msra.mxu0 0.0
  %118 = vmatpush.msra.mxu0 0.0
  %119 = vmatpush.msra.mxu0 0.0
  %120 = vmatpush.msra.mxu0 0.0
  %121 = vmatpush.msra.mxu0 0.0
  %122 = vmatpush.msra.mxu0 0.0
  %123 = vmatpush.msra.mxu0 %v37
  %124 = vmatmul.f32.gmra.mxu0 %v86
  %v125 = vpop.f32.mrf.mxu0
  %v126 = vadd.f32 %v83, %v125
  %127 = vdwg.mxu0
  %128 = vrot.lane.b32.xlu0 %v14, 112
  %v129 = vpop.permute.xlu0 %128
  %130 = vrot.lane.b32.xlu0 %v15, 112
  %v131 = vpop.permute.xlu0 %130
  %vm132 = vcmp.lt.s32.totalorder %v17, 112
  %v133 = vsel %vm132, %v129, %v131
  %v134 = vsel %vm132, %v131, %v129
  %vm135 = vcmp.ge.s32.totalorder %v17, 4294967280
  %vm136 = vcmp.ge.s32.totalorder %v18, 4294967280
  %vm137 = vcmp.lt.s32.totalorder %v17, 240
  %vm138 = vcmp.lt.s32.totalorder %v18, 240
  %vm139 = vmand %vm135, %vm137
  %vm140 = vmand %vm136, %vm138
  %v141 = vsel %vm139, 1, 0
  %v142 = vsel %vm140, 1, 0
  %vm143 = vcmp.eq.s32.totalorder %v141, 1
  %vm144 = vcmp.eq.s32.totalorder %v142, 1
  %v145 = vsel %vm143, %v133, 0.0
  %v146 = vsel %vm144, %v134, 0.0
  %s147 = scalar_lea.vmem %s1, 16
  %v148 = vld [vmem:[%s147] sm:$0xff]
  %v150 = vsel %vm41, %v148, 0
  %152 = vmatpush.msra.mxu0 0.0
  %153 = vmatpush.msra.mxu0 0.0
  %154 = vmatpush.msra.mxu0 0.0
  %155 = vmatpush.msra.mxu0 0.0
  %156 = vmatpush.msra.mxu0 0.0
  %157 = vmatpush.msra.mxu0 0.0
  %158 = vmatpush.msra.mxu0 0.0
  %159 = vmatpush.msra.mxu0 0.0
  %160 = vmatpush.msra.mxu0 0.0
  %161 = vmatpush.msra.mxu0 0.0
  %162 = vmatpush.msra.mxu0 0.0
  %163 = vmatpush.msra.mxu0 0.0
  %164 = vmatpush.msra.mxu0 0.0
  %165 = vmatpush.msra.mxu0 0.0
  %166 = vmatpush.msra.mxu0 0.0
  %167 = vmatpush.msra.mxu0 %v145
  %168 = vmatmul.f32.gmra.mxu0 %v150
  %v169 = vpop.f32.mrf.mxu0
  %v170 = vadd.f32 0.0, %v169
  %171 = vdwg.mxu0
  %172 = vmatpush.msra.mxu0 0.0
  %173 = vmatpush.msra.mxu0 0.0
  %174 = vmatpush.msra.mxu0 0.0
  %175 = vmatpush.msra.mxu0 0.0
  %176 = vmatpush.msra.mxu0 0.0
  %177 = vmatpush.msra.mxu0 0.0
  %178 = vmatpush.msra.mxu0 0.0
  %179 = vmatpush.msra.mxu0 0.0
  %180 = vmatpush.msra.mxu0 0.0
  %181 = vmatpush.msra.mxu0 0.0
  %182 = vmatpush.msra.mxu0 0.0
  %183 = vmatpush.msra.mxu0 0.0
  %184 = vmatpush.msra.mxu0 0.0
  %185 = vmatpush.msra.mxu0 0.0
  %186 = vmatpush.msra.mxu0 0.0
  %187 = vmatpush.msra.mxu0 %v146
  %188 = vmatmul.f32.gmra.mxu0 %v150
  %v189 = vpop.f32.mrf.mxu0
  %v190 = vadd.f32 0.0, %v189
  %191 = vdwg.mxu0
  %v192 = vadd.f32 %v106, %v170
  %v193 = vadd.f32 %v126, %v190
  %v194 = vld [vmem:[%s2] sm:$0xff]
  %196 = vset.pattern.permute.xlu0 0
  %197 = vperm.xlu0 %196, %v194
  %v198 = vpop.permute.xlu0 %197
  %v200 = vadd.f32 %v192, %v198
  %v201 = vadd.f32 %v193, %v198
  %202 = vst [vmem:[%s3] sm:$0xff] %v200
  %203 = vst [vmem:[%s3 + $0x8] sm:$0xff] %v201
  // Predicated region
  $region14: #{tcl_forward.1} parent=0 // pred_check
    _
  $region15: #{tcl_forward.1} parent=0 // pred_check_branch
    %205 = sbr.rel (0) target = $region17
  $region16: #{tcl_forward.1} parent=0 // pred_region
    _
  $region17: #{tcl_forward.1} parent=0 // pred_fallthru
    _
  // Predicated region
  $region18: #{tcl_forward.1} parent=0 // pred_check
    _
  $region19: #{tcl_forward.1} parent=0 // pred_check_branch
    %207 = sbr.rel (0) target = $region21
  $region20: #{tcl_forward.1} parent=0 // pred_region
    _
  $region21: #{tcl_forward.1} parent=0 // pred_fallthru
    _

</llo_original>
